<compile_context>
chip_gen: v5e
topology: v5e:2x2
jax: 0.10.0
libtpu: 0.0.40
codegen_flags: <defaults>
</compile_context>

<pallas_src>
import jax
import jax.numpy as jnp
from jax.experimental import pallas as pl
from jax.experimental.pallas import tpu as pltpu


def _round_up(v, m):
    return ((v + m - 1) // m) * m


_VMEM_BUDGET = 48 << 20  # working-set cap so the tiles fit v5e/v6e/v7x VMEM


def _vmem_estimate(tm, d, out_pad):
    x_bytes = 2 * tm * d * 2          # double-buffered bf16 x tiles
    w_bytes = d * out_pad * 2         # resident bf16 fused weight (1 buffer)
    b_bytes = out_pad * 4             # resident f32 bias row
    o_bytes = 2 * tm * out_pad * 4    # double-buffered f32 output tiles
    return x_bytes + w_bytes + b_bytes + o_bytes


def _bbox_head_fused_kernel(x_ref, w_ref, b_ref, out_ref):
    """One fused FC: (tm, D)bf16 @ (D, out_pad)bf16 -> f32 acc, + bias."""
    acc = jnp.dot(x_ref[...], w_ref[...], preferred_element_type=jnp.float32)
    out_ref[...] = (acc + b_ref[...]).astype(out_ref.dtype)


def prepare_fused_params(w_cls, b_cls, w_reg, b_reg):
    """Hoisted, call-time-invariant weight prep.

    Returns the pre-transposed, concatenated, lane-padded bf16 weight
    (D, out_pad), the matching padded f32 bias row (1, out_pad), and the true
    output widths.
    """
    num_classes = w_cls.shape[0]
    out_reg = w_reg.shape[0]
    out_total = num_classes + out_reg
    out_pad = _round_up(out_total, 128)

    w_fused = jnp.concatenate([w_cls.T, w_reg.T], axis=1)           # (D, out_total)
    w_fused = jnp.pad(w_fused, ((0, 0), (0, out_pad - out_total)))  # (D, out_pad)
    w_fused = w_fused.astype(jnp.bfloat16)
    b_fused = jnp.concatenate([b_cls, b_reg]).reshape(1, -1).astype(jnp.float32)
    b_fused = jnp.pad(b_fused, ((0, 0), (0, out_pad - out_total)))  # (1, out_pad)
    return w_fused, b_fused, num_classes, out_reg


def bbox_head_forward(x, w_fused, b_fused, num_classes, out_reg, *, tm=256):
    """x: (N, C, H, W); w_fused: (D, out_pad) bf16; b_fused: (1, out_pad) f32."""
    n = x.shape[0]
    d = x.shape[1] * x.shape[2] * x.shape[3]
    # Matches torch .view(N, -1); bf16 cast mirrors @auto_fp16 on the forward.
    x_flat = x.reshape(n, d).astype(jnp.bfloat16)
    out_pad = w_fused.shape[1]

    # Row-tile size: multiple of 8 (sublane), capped by the batch.
    tm_eff = max(8, min(_round_up(tm, 8), _round_up(n, 8)))
    # Give both v7x TensorCores work whenever N allows it.
    if pl.cdiv(n, tm_eff) == 1 and n > 8:
        tm_eff = max(8, _round_up(-(-n // 2), 8))
    # Shrink tm until the working set fits the per-generation VMEM budget.
    while tm_eff > 8 and _vmem_estimate(tm_eff, d, out_pad) > _VMEM_BUDGET:
        tm_eff = max(8, _round_up(tm_eff // 2, 8))

    grid_n = pl.cdiv(n, tm_eff)   # ragged last block handled by Pallas, no pad

    vmem_limit = int(min(
        max(int(_vmem_estimate(tm_eff, d, out_pad) * 1.25) + (2 << 20), 16 << 20),
        56 << 20))

    cost = pl.CostEstimate(
        flops=2 * n * d * out_pad,
        bytes_accessed=n * d * 2 + d * out_pad * 2 + out_pad * 4 + n * out_pad * 4,
        transcendentals=0)

    def make_call(single_buffer_resident):
        resident_kwargs = {}
        if single_buffer_resident and hasattr(pl, "Buffered"):
            # Constant index_map blocks only need one buffer (halves their VMEM).
            resident_kwargs = dict(pipeline_mode=pl.Buffered(1))
        return pl.pallas_call(
            _bbox_head_fused_kernel,
            out_shape=jax.ShapeDtypeStruct((n, out_pad), jnp.float32),
            grid=(grid_n,),
            in_specs=[
                pl.BlockSpec((tm_eff, d), lambda i: (i, 0)),        # x tile, pipelined
                pl.BlockSpec((d, out_pad), lambda i: (0, 0),        # weight, resident
                             **resident_kwargs),
                pl.BlockSpec((1, out_pad), lambda i: (0, 0),        # bias, resident
                             **resident_kwargs),
            ],
            out_specs=pl.BlockSpec((tm_eff, out_pad), lambda i: (i, 0)),
            compiler_params=pltpu.CompilerParams(
                dimension_semantics=("parallel",),
                vmem_limit_bytes=vmem_limit),
            cost_estimate=cost,
        )

    try:
        fused_out = make_call(True)(x_flat, w_fused, b_fused)
    except Exception:
        # Fallback if this jax version rejects Buffered(1) on resident blocks.
        fused_out = make_call(False)(x_flat, w_fused, b_fused)

    cls_score = fused_out[:, :num_classes]
    bbox_pred = fused_out[:, num_classes:num_classes + out_reg]
    return cls_score, bbox_pred


def init_bbox_head_params(key, in_channels, roi_feat_size, num_classes,
                          reg_class_agnostic=False):
    """Deterministic init mirroring BBoxHead.init_weights()."""
    d = in_channels * roi_feat_size * roi_feat_size
    out_reg = 4 if reg_class_agnostic else 4 * num_classes
    k_cls, k_reg = jax.random.split(key)
    # fc_cls: normal(0, 0.01), bias 0 ; fc_reg: normal(0, 0.001), bias 0
    w_cls = 0.01 * jax.random.normal(k_cls, (num_classes, d), dtype=jnp.float32)
    b_cls = jnp.zeros((num_classes,), dtype=jnp.float32)
    w_reg = 0.001 * jax.random.normal(k_reg, (out_reg, d), dtype=jnp.float32)
    b_reg = jnp.zeros((out_reg,), dtype=jnp.float32)
    return w_cls, b_cls, w_reg, b_reg


if __name__ == "__main__":
    # Small, module-consistent shapes: N RoIs, C channels, 7x7 RoI feature map.
    N = 16
    C = 16
    ROI = 7
    NUM_CLASSES = 8

    key = jax.random.PRNGKey(0)
    k_x, k_p = jax.random.split(key)

    x = jax.random.normal(k_x, (N, C, ROI, ROI), dtype=jnp.float32)  # NCHW
    w_cls, b_cls, w_reg, b_reg = init_bbox_head_params(
        k_p, C, ROI, NUM_CLASSES, reg_class_agnostic=False)

    # One-time fused/padded/bf16 weight prep (hoisted out of the hot path).
    w_fused, b_fused, n_cls, n_reg = prepare_fused_params(
        w_cls, b_cls, w_reg, b_reg)

    # tm=8 -> 2 grid steps at the demo batch size, exercising the ragged tiling.
    cls_score, bbox_pred = bbox_head_forward(
        x, w_fused, b_fused, n_cls, n_reg, tm=8)
    jax.block_until_ready((cls_score, bbox_pred))

    # Reference #1: same bf16-input / f32-accumulation math as the kernel.
    x_flat = x.reshape(N, -1)
    x_bf = x_flat.astype(jnp.bfloat16)
    ref_cls_bf = jnp.dot(x_bf, w_cls.T.astype(jnp.bfloat16),
                         preferred_element_type=jnp.float32) + b_cls
    ref_reg_bf = jnp.dot(x_bf, w_reg.T.astype(jnp.bfloat16),
                         preferred_element_type=jnp.float32) + b_reg
    # Reference #2: full-f32 math (loose check; bf16 rounding expected).
    ref_cls_f32 = x_flat @ w_cls.T + b_cls
    ref_reg_f32 = x_flat @ w_reg.T + b_reg

    assert cls_score.shape == (N, NUM_CLASSES)
    assert bbox_pred.shape == (N, 4 * NUM_CLASSES)
    assert jnp.allclose(cls_score, ref_cls_bf, atol=5e-3, rtol=5e-3)
    assert jnp.allclose(bbox_pred, ref_reg_bf, atol=5e-3, rtol=5e-3)
    assert jnp.allclose(cls_score, ref_cls_f32, atol=5e-2, rtol=5e-2)
    assert jnp.allclose(bbox_pred, ref_reg_f32, atol=5e-2, rtol=5e-2)

    print("KERNEL_OK")
</pallas_src>

<mosaic_0001>
module attributes {stable_mosaic.version = 11 : i64} {
  func.func @_bbox_head_fused_kernel(%arg0: i32, %arg1: memref<8x784xbf16, #tpu.memory_space<vmem>>, %arg2: memref<784x128xbf16, #tpu.memory_space<vmem>>, %arg3: memref<1x128xf32, #tpu.memory_space<vmem>>, %arg4: memref<8x128xf32, #tpu.memory_space<vmem>>) attributes {dimension_semantics = [#tpu.dimension_semantics<parallel>], iteration_bounds = array<i64: 2>, scalar_prefetch = 0 : i64, scratch_operands = 0 : i64, tpu.core_type = #tpu.core_type<tc>, window_params = [{transform_indices = @transform_0, window_bounds = array<i64: 8, 784>}, {pipeline_mode = #tpu.pipeline_mode<synchronous>, transform_indices = @transform_1, window_bounds = array<i64: 784, 128>}, {pipeline_mode = #tpu.pipeline_mode<synchronous>, transform_indices = @transform_2, window_bounds = array<i64: 1, 128>}, {transform_indices = @transform_3, window_bounds = array<i64: 8, 128>}]} {
    %c0 = arith.constant 0 : index
    %c0_0 = arith.constant 0 : index
    %0 = vector.load %arg1[%c0, %c0_0] : memref<8x784xbf16, #tpu.memory_space<vmem>>, vector<8x784xbf16>
    %c0_1 = arith.constant 0 : index
    %c0_2 = arith.constant 0 : index
    %1 = vector.load %arg2[%c0_1, %c0_2] : memref<784x128xbf16, #tpu.memory_space<vmem>>, vector<784x128xbf16>
    %cst = arith.constant dense<0.000000e+00> : vector<8x128xf32>
    %2 = tpu.matmul %0, %1, %cst {dimension_numbers = #tpu.dot_dimension_numbers<[1], [0], [0], [1], [0, 0, 1, 1], [], []>} : vector<8x784xbf16>, vector<784x128xbf16>, vector<8x128xf32> -> vector<8x128xf32>
    %c0_3 = arith.constant 0 : index
    %c0_4 = arith.constant 0 : index
    %3 = vector.load %arg3[%c0_3, %c0_4] : memref<1x128xf32, #tpu.memory_space<vmem>>, vector<1x128xf32>
    %4 = vector.broadcast %3 : vector<1x128xf32> to vector<8x128xf32>
    %5 = arith.addf %2, %4 : vector<8x128xf32>
    %c0_5 = arith.constant 0 : index
    %c0_6 = arith.constant 0 : index
    %6 = vector.load %arg4[%c0_5, %c0_6] : memref<8x128xf32, #tpu.memory_space<vmem>>, vector<8x128xf32>
    tpu.vector_store %arg4[%c0_5, %c0_6], %5 {strides = array<i32>} : memref<8x128xf32, #tpu.memory_space<vmem>>, vector<8x128xf32>,
    return
  }
  func.func @transform_0(%arg0: i32) -> (i32, i32) {
    %c0_i32 = arith.constant 0 : i32
    %c0_i32_0 = arith.constant 0 : i32
    return %arg0, %c0_i32 : i32, i32
  }
  func.func @transform_1(%arg0: i32) -> (i32, i32) {
    %c0_i32 = arith.constant 0 : i32
    %c0_i32_0 = arith.constant 0 : i32
    %c0_i32_1 = arith.constant 0 : i32
    return %c0_i32, %c0_i32_0 : i32, i32
  }
  func.func @transform_2(%arg0: i32) -> (i32, i32) {
    %c0_i32 = arith.constant 0 : i32
    %c0_i32_0 = arith.constant 0 : i32
    %c0_i32_1 = arith.constant 0 : i32
    return %c0_i32, %c0_i32_0 : i32, i32
  }
  func.func @transform_3(%arg0: i32) -> (i32, i32) {
    %c0_i32 = arith.constant 0 : i32
    %c0_i32_0 = arith.constant 0 : i32
    return %arg0, %c0_i32 : i32, i32
  }
}

module attributes {stable_mosaic.version = 11 : i64} {
  func.func @_bbox_head_fused_kernel(%arg0: i32, %arg1: memref<8x784xbf16, #tpu.memory_space<vmem>>, %arg2: memref<784x128xbf16, #tpu.memory_space<vmem>>, %arg3: memref<1x128xf32, #tpu.memory_space<vmem>>, %arg4: memref<8x128xf32, #tpu.memory_space<vmem>>) attributes {dimension_semantics = [#tpu.dimension_semantics<parallel>], iteration_bounds = array<i64: 2>, scalar_prefetch = 0 : i64, scratch_operands = 0 : i64, tpu.core_type = #tpu.core_type<tc>, window_params = [{transform_indices = @transform_0, window_bounds = array<i64: 8, 784>}, {pipeline_mode = #tpu.pipeline_mode<synchronous>, transform_indices = @transform_1, window_bounds = array<i64: 784, 128>}, {pipeline_mode = #tpu.pipeline_mode<synchronous>, transform_indices = @transform_2, window_bounds = array<i64: 1, 128>}, {transform_indices = @transform_3, window_bounds = array<i64: 8, 128>}]} {
    %c0 = arith.constant 0 : index
    %c0_0 = arith.constant 0 : index
    %0 = vector.load %arg1[%c0, %c0_0] : memref<8x784xbf16, #tpu.memory_space<vmem>>, vector<8x784xbf16>
    %c0_1 = arith.constant 0 : index
    %c0_2 = arith.constant 0 : index
    %1 = vector.load %arg2[%c0_1, %c0_2] : memref<784x128xbf16, #tpu.memory_space<vmem>>, vector<784x128xbf16>
    %cst = arith.constant dense<0.000000e+00> : vector<8x128xf32>
    %2 = tpu.matmul %0, %1, %cst {dimension_numbers = #tpu.dot_dimension_numbers<[1], [0], [0], [1], [0, 0, 1, 1], [], []>} : vector<8x784xbf16>, vector<784x128xbf16>, vector<8x128xf32> -> vector<8x128xf32>
    %c0_3 = arith.constant 0 : index
    %c0_4 = arith.constant 0 : index
    %3 = vector.load %arg3[%c0_3, %c0_4] : memref<1x128xf32, #tpu.memory_space<vmem>>, vector<1x128xf32>
    %4 = vector.broadcast %3 : vector<1x128xf32> to vector<8x128xf32>
    %5 = arith.addf %2, %4 : vector<8x128xf32>
    %c0_5 = arith.constant 0 : index
    %c0_6 = arith.constant 0 : index
    %6 = vector.load %arg4[%c0_5, %c0_6] : memref<8x128xf32, #tpu.memory_space<vmem>>, vector<8x128xf32>
    tpu.vector_store %arg4[%c0_5, %c0_6], %5 {strides = array<i32>} : memref<8x128xf32, #tpu.memory_space<vmem>>, vector<8x128xf32>,
    return
  }
  func.func @transform_0(%arg0: i32) -> (i32, i32) {
    %c0_i32 = arith.constant 0 : i32
    %c0_i32_0 = arith.constant 0 : i32
    return %arg0, %c0_i32 : i32, i32
  }
  func.func @transform_1(%arg0: i32) -> (i32, i32) {
    %c0_i32 = arith.constant 0 : i32
    %c0_i32_0 = arith.constant 0 : i32
    %c0_i32_1 = arith.constant 0 : i32
    return %c0_i32, %c0_i32_0 : i32, i32
  }
  func.func @transform_2(%arg0: i32) -> (i32, i32) {
    %c0_i32 = arith.constant 0 : i32
    %c0_i32_0 = arith.constant 0 : i32
    %c0_i32_1 = arith.constant 0 : i32
    return %c0_i32, %c0_i32_0 : i32, i32
  }
  func.func @transform_3(%arg0: i32) -> (i32, i32) {
    %c0_i32 = arith.constant 0 : i32
    %c0_i32_0 = arith.constant 0 : i32
    return %arg0, %c0_i32 : i32, i32
  }
}

</mosaic_0001>

<llo_original>
// kernel: tpu_custom_call.1
$region0: #{tpu_custom_call.1}
  #allocation0 [shape = 'u32[]', space=smem, size = 0x4, offset = 0x4, fixed_abs, tag = 'smem constant byte address 0x4 - core index']
  #allocation1 [shape = 'u32[72,128]{1,0:T(1,128)}', space=vmem, size = 0x9000, scoped, tag = 'internal scratch']
  %s0 = inlined_call_operand.hbm [shape: bf16[16,784], index: 0, kind: input, shape index: {}]
  %s1 = inlined_call_operand.hbm [shape: bf16[784,128], index: 1, kind: input, shape index: {}]
  %s2 = inlined_call_operand.vmem [shape: f32[1,128], index: 2, kind: input, shape index: {}]
  %s3 = inlined_call_operand.hbm [shape: f32[16,128], index: 3, kind: output, shape index: {}]
  %s4 = sld [smem:[#allocation0]]
  $region53: #{tpu_custom_call.1} parent=0
    _
  %s6 = ssub.s32 1, %s4
  %s7 = scalar_select 0, %s6, %s4
  $region1: #{tpu_custom_call.1} parent=0
    #allocation2 [shape = 'u8[28672]{0}', space=vmem, size = 0x7000, scoped, tag = 'input window, operand 0']
    #allocation3 [shape = 's32[2]{0}', space=sflag, size = 0x8, scoped, tag = 'scoped memory for tpu_custom_call.1']
    #allocation4 [shape = 's32[2]{0}', space=sflag, size = 0x8, scoped, tag = 'scoped memory for tpu_custom_call.1']
    #allocation5 [shape = 'u8[200704]{0}', space=vmem, size = 0x31000, scoped, tag = 'input window, operand 1, single buffered']
    #allocation6 [shape = 's32[1]{0}', space=sflag, size = 0x4, scoped, tag = 'scoped memory for tpu_custom_call.1']
    #allocation7 [shape = 'u8[8192]{0}', space=vmem, size = 0x2000, scoped, tag = 'output window, operand 0']
    %8 = vsyncpa [#allocation3], 0
    %s9 = scalar_lea.sflag [#allocation3], 1
    %10 = vsyncpa %s9, 0
    %11 = vsyncpa [#allocation6], 0
    %12 = vsyncpa [#allocation4], 0
    %s13 = scalar_lea.sflag [#allocation4], 1
    %14 = vsyncpa %s13, 0
    loop: start=0, step=1, limit=4
    $region2: #{tpu_custom_call.1} parent=1 // loop_pre_header
      _
    $region3: #{tpu_custom_call.1} parent=1 // loop_header
      %s16 = sphi 0, %s20
      %p17 = scmp.ge.s32.totalorder %s16, 4
      %s26 = sphi 0, %s28
      %s29 = sphi 0, %s26
      %s30 = sphi 0, %s29
      %s46 = sphi 0, %s30
      %s50 = sphi 0, %s50
      %s52 = sphi 0, %s50
      %s53 = sphi 0, %s52
      %s67 = sphi 0, %s53
      %s71 = sphi 0, %s71
      %s73 = sphi 0, %s71
      %s74 = sphi 0, %s73
      %s88 = sphi 0, %s74
      %s94 = sphi 0, %s96
      %s97 = sphi 0, %s94
      %s98 = sphi 0, %s97
      %s114 = sphi 0, %s98
    $region4: #{tpu_custom_call.1} parent=1 // loop_header_branch
      %19 = sbr.rel (%p17) target = $region8
    $region5: #{tpu_custom_call.1} parent=1 // loop_body
      %s21 = ssub.s32 %s16, 1
      %s22 = ssub.s32 %s16, 2
      %s23 = sadd.s32 %s16, 1
      %s24 = ssub.s32 %s16, %s23
      %p25 = scmp.eq.s32.totalorder %s24, 0
      %s27 = sadd.s32 %s26, 1
      %s28 = scalar_select %p25, %s26, %s27
      %p31 = pneg %p25
      %p32 = scmp.eq.s32.totalorder %s16, 1
      %p33 = por %p31, %p32
      %p34 = scmp.ne.s32.totalorder %s26, %s29
      %p35 = scmp.eq.s32.totalorder %s16, 0
      %p36 = por %p34, %p35
      %p37 = scmp.ne.s32.totalorder %s26, %s29
      %p38 = scmp.eq.s32.totalorder %s21, 1
      %p39 = por %p37, %p38
      %p40 = scmp.ne.s32.totalorder %s29, %s30
      %p41 = scmp.eq.s32.totalorder %s21, 0
      %p42 = por %p40, %p41
      %p43 = scmp.ne.s32.totalorder %s29, %s30
      %p44 = scmp.eq.s32.totalorder %s22, 1
      %p45 = por %p43, %p44
      %p47 = scmp.ne.s32.totalorder %s30, %s46
      %p48 = scmp.eq.s32.totalorder %s22, 0
      %p49 = por %p47, %p48
      %s51 = sadd.s32 %s50, 1
      %p54 = scmp.eq.s32.totalorder %s16, 1
      %p55 = scmp.ne.s32.totalorder %s50, %s52
      %p56 = scmp.eq.s32.totalorder %s16, 0
      %p57 = por %p55, %p56
      %p58 = scmp.ne.s32.totalorder %s50, %s52
      %p59 = scmp.eq.s32.totalorder %s21, 1
      %p60 = por %p58, %p59
      %p61 = scmp.ne.s32.totalorder %s52, %s53
      %p62 = scmp.eq.s32.totalorder %s21, 0
      %p63 = por %p61, %p62
      %p64 = scmp.ne.s32.totalorder %s52, %s53
      %p65 = scmp.eq.s32.totalorder %s22, 1
      %p66 = por %p64, %p65
      %p68 = scmp.ne.s32.totalorder %s53, %s67
      %p69 = scmp.eq.s32.totalorder %s22, 0
      %p70 = por %p68, %p69
      %s72 = sadd.s32 %s71, 1
      %p75 = scmp.eq.s32.totalorder %s16, 1
      %p76 = scmp.ne.s32.totalorder %s71, %s73
      %p77 = scmp.eq.s32.totalorder %s16, 0
      %p78 = por %p76, %p77
      %p79 = scmp.ne.s32.totalorder %s71, %s73
      %p80 = scmp.eq.s32.totalorder %s21, 1
      %p81 = por %p79, %p80
      %p82 = scmp.ne.s32.totalorder %s73, %s74
      %p83 = scmp.eq.s32.totalorder %s21, 0
      %p84 = por %p82, %p83
      %p85 = scmp.ne.s32.totalorder %s73, %s74
      %p86 = scmp.eq.s32.totalorder %s22, 1
      %p87 = por %p85, %p86
      %p89 = scmp.ne.s32.totalorder %s74, %s88
      %p90 = scmp.eq.s32.totalorder %s22, 0
      %p91 = por %p89, %p90
      %s92 = ssub.s32 %s16, %s23
      %p93 = scmp.eq.s32.totalorder %s92, 0
      %s95 = sadd.s32 %s94, 1
      %s96 = scalar_select %p93, %s94, %s95
      %p99 = pneg %p93
      %p100 = scmp.eq.s32.totalorder %s16, 1
      %p101 = por %p99, %p100
      %p102 = scmp.ne.s32.totalorder %s94, %s97
      %p103 = scmp.eq.s32.totalorder %s16, 0
      %p104 = por %p102, %p103
      %p105 = scmp.ne.s32.totalorder %s94, %s97
      %p106 = scmp.eq.s32.totalorder %s21, 1
      %p107 = por %p105, %p106
      %p108 = scmp.ne.s32.totalorder %s97, %s98
      %p109 = scmp.eq.s32.totalorder %s21, 0
      %p110 = por %p108, %p109
      %p111 = scmp.ne.s32.totalorder %s97, %s98
      %p112 = scmp.eq.s32.totalorder %s22, 1
      %p113 = por %p111, %p112
      %p115 = scmp.ne.s32.totalorder %s98, %s114
      %p116 = scmp.eq.s32.totalorder %s22, 0
      %p117 = por %p115, %p116
      %p118 = scmp.le.s32.totalorder 1, %s16
      %p119 = scmp.lt.s32.totalorder %s16, 3
      %p120 = pnand %p118, %p119
      %p121 = pneg %p120
      // Predicated region
      $region9: #{tpu_custom_call.1} parent=5 // pred_check
        _
      $region10: #{tpu_custom_call.1} parent=5 // pred_check_branch
        %123 = sbr.rel (%p120) target = $region12
      $region11: #{tpu_custom_call.1} parent=5 // pred_region
        %s124 = ssub.s32 %s16, 1
        // Predicated region
        $region13: #{tpu_custom_call.1} parent=11 // pred_check
          %p125 = pneg %p63
        $region14: #{tpu_custom_call.1} parent=11 // pred_check_branch
          %127 = sbr.rel (%p125) target = $region16
        $region15: #{tpu_custom_call.1} parent=11 // pred_region
          %129 = vsyncadd [#allocation6], 0
          %s130 = sshll.u32 %s1, 4
          %s131 = int_to_ptr.hbm [resolvable:$true] %s130
          %s132 = sshll.u32 [#allocation5], 4
          %s133 = int_to_ptr.vmem [resolvable:$true] %s132
          %138 = dma.hbm_to_vmem [thread:$0]  %s131, 6272, %s133, [#allocation6], 64, 64, 4
        $region16: #{tpu_custom_call.1} parent=11 // pred_fallthru
          _
        // Predicated region
        $region17: #{tpu_custom_call.1} parent=11 // pred_check
          %p139 = pneg %p84
        $region18: #{tpu_custom_call.1} parent=11 // pred_check_branch
          %141 = sbr.rel (%p139) target = $region20
        $region19: #{tpu_custom_call.1} parent=11 // pred_region
          _
        $region20: #{tpu_custom_call.1} parent=11 // pred_fallthru
          _
      $region12: #{tpu_custom_call.1} parent=5 // pred_fallthru
        _
      %p142 = scmp.lt.s32.totalorder %s16, 2
      // Predicated region
      $region21: #{tpu_custom_call.1} parent=5 // pred_check
        %p143 = pneg %p142
      $region22: #{tpu_custom_call.1} parent=5 // pred_check_branch
        %145 = sbr.rel (%p143) target = $region24
      $region23: #{tpu_custom_call.1} parent=5 // pred_region
        // Predicated region
        $region25: #{tpu_custom_call.1} parent=23 // pred_check
          %p146 = pneg %p36
        $region26: #{tpu_custom_call.1} parent=23 // pred_check_branch
          %148 = sbr.rel (%p146) target = $region28
        $region27: #{tpu_custom_call.1} parent=23 // pred_region
          %s149 = sand.u32 %s26, 1
          %s150 = scalar_lea.sflag [#allocation3], %s149
          %s151 = sand.u32 %s26, 1
          %s152 = smul.addr %s151, 28
          %s153 = scalar_lea.vmem [#allocation2], %s152
          %155 = vsyncadd %s150, 0
          %s156 = smul.addr %s16, 7
          %s157 = smul.addr %s156, 4
          %s158 = scalar_lea.hbm %s0, %s157
          %s160 = sshll.u32 %s158, 4
          %s161 = int_to_ptr.hbm [resolvable:$true] %s160
          %s162 = sshll.u32 %s153, 4
          %s163 = int_to_ptr.vmem [resolvable:$true] %s162
          %165 = dma.hbm_to_vmem [thread:$0]  %s161, 448, %s163, %s150
        $region28: #{tpu_custom_call.1} parent=23 // pred_fallthru
          _
      $region24: #{tpu_custom_call.1} parent=5 // pred_fallthru
        _
      %p166 = scmp.le.s32.totalorder 1, %s16
      %p167 = scmp.lt.s32.totalorder %s16, 3
      %p168 = pnand %p166, %p167
      %p169 = pneg %p168
      // Predicated region
      $region29: #{tpu_custom_call.1} parent=5 // pred_check
        _
      $region30: #{tpu_custom_call.1} parent=5 // pred_check_branch
        %171 = sbr.rel (%p168) target = $region32
      $region31: #{tpu_custom_call.1} parent=5 // pred_region
        %s172 = ssub.s32 %s16, 1
        %s173 = sand.u32 %s29, 1
        %s174 = scalar_lea.sflag [#allocation3], %s173
        %s175 = sand.u32 %s29, 1
        %s176 = smul.addr %s175, 28
        %s177 = scalar_lea.vmem [#allocation2], %s176
        // Predicated region
        $region33: #{tpu_custom_call.1} parent=31 // pred_check
          %p178 = pneg %p42
        $region34: #{tpu_custom_call.1} parent=31 // pred_check_branch
          %180 = sbr.rel (%p178) target = $region36
        $region35: #{tpu_custom_call.1} parent=31 // pred_region
          %182 = dma.done %s174, 448
        $region36: #{tpu_custom_call.1} parent=31 // pred_fallthru
          _
        // Predicated region
        $region37: #{tpu_custom_call.1} parent=31 // pred_check
          %p183 = pneg %p63
        $region38: #{tpu_custom_call.1} parent=31 // pred_check_branch
          %185 = sbr.rel (%p183) target = $region40
        $region39: #{tpu_custom_call.1} parent=31 // pred_region
          %187 = dma.done [#allocation6], 6272
        $region40: #{tpu_custom_call.1} parent=31 // pred_fallthru
          _
        %s188 = sand.u32 %s29, 1
        %s189 = scalar_lea.sflag [#allocation3], %s188
        %s190 = sand.u32 %s29, 1
        %s191 = smul.addr %s190, 28
        %s192 = scalar_lea.vmem [#allocation2], %s191
        %p193 = pneg %p42
        %p194 = pneg %p39
        %p195 = pneg %p63
        %p196 = pneg %p60
        %p197 = pneg %p84
        %p198 = pneg %p81
        %p199 = pneg %p110
        %p200 = pneg %p107
        %s201 = sand.u32 %s97, 1
        %s202 = scalar_lea.sflag [#allocation4], %s201
        %s203 = sand.u32 %s97, 1
        %s204 = smul.addr %s203, 8
        %s205 = scalar_lea.vmem [#allocation7], %s204
        %v207 = vld [vmem:[%s177] sm:$0xff]
        %v208 = vld [vmem:[%s177 + $0x8] sm:$0xff]
        %v209 = vld [vmem:[%s177 + $0x10] sm:$0xff]
        %v210 = vld [vmem:[%s177 + $0x18] sm:$0xf]
        %v211 = vld [vmem:[#allocation5] sm:$0xf]
        %v212 = vld [vmem:[#allocation5 + $0x4] sm:$0xf]
        %v213 = vld [vmem:[#allocation5 + $0x8] sm:$0xf]
        %v214 = vld [vmem:[#allocation5 + $0xc] sm:$0xf]
        %v215 = vld [vmem:[#allocation5 + $0x10] sm:$0xf]
        %v216 = vld [vmem:[#allocation5 + $0x14] sm:$0xf]
        %v217 = vld [vmem:[#allocation5 + $0x18] sm:$0xf]
        %v218 = vld [vmem:[#allocation5 + $0x1c] sm:$0xf]
        %v219 = vld [vmem:[#allocation5 + $0x20] sm:$0xf]
        %v220 = vld [vmem:[#allocation5 + $0x24] sm:$0xf]
        %v221 = vld [vmem:[#allocation5 + $0x28] sm:$0xf]
        %v222 = vld [vmem:[#allocation5 + $0x2c] sm:$0xf]
        %v223 = vld [vmem:[#allocation5 + $0x30] sm:$0xf]
        %v224 = vld [vmem:[#allocation5 + $0x34] sm:$0xf]
        %v225 = vld [vmem:[#allocation5 + $0x38] sm:$0xf]
        %v226 = vld [vmem:[#allocation5 + $0x3c] sm:$0xf]
        %v227 = vld [vmem:[#allocation5 + $0x40] sm:$0xf]
        %v228 = vld [vmem:[#allocation5 + $0x44] sm:$0xf]
        %v229 = vld [vmem:[#allocation5 + $0x48] sm:$0xf]
        %v230 = vld [vmem:[#allocation5 + $0x4c] sm:$0xf]
        %v231 = vld [vmem:[#allocation5 + $0x50] sm:$0xf]
        %v232 = vld [vmem:[#allocation5 + $0x54] sm:$0xf]
        %v233 = vld [vmem:[#allocation5 + $0x58] sm:$0xf]
        %v234 = vld [vmem:[#allocation5 + $0x5c] sm:$0xf]
        %v235 = vld [vmem:[#allocation5 + $0x60] sm:$0xf]
        %v236 = vld [vmem:[#allocation5 + $0x64] sm:$0xf]
        %v237 = vld [vmem:[#allocation5 + $0x68] sm:$0xf]
        %v238 = vld [vmem:[#allocation5 + $0x6c] sm:$0xf]
        %v239 = vld [vmem:[#allocation5 + $0x70] sm:$0xf]
        %v240 = vld [vmem:[#allocation5 + $0x74] sm:$0xf]
        %v241 = vld [vmem:[#allocation5 + $0x78] sm:$0xf]
        %v242 = vld [vmem:[#allocation5 + $0x7c] sm:$0xf]
        %v243 = vld [vmem:[#allocation5 + $0x80] sm:$0xf]
        %v244 = vld [vmem:[#allocation5 + $0x84] sm:$0xf]
        %v245 = vld [vmem:[#allocation5 + $0x88] sm:$0xf]
        %v246 = vld [vmem:[#allocation5 + $0x8c] sm:$0xf]
        %v247 = vld [vmem:[#allocation5 + $0x90] sm:$0xf]
        %v248 = vld [vmem:[#allocation5 + $0x94] sm:$0xf]
        %v249 = vld [vmem:[#allocation5 + $0x98] sm:$0xf]
        %v250 = vld [vmem:[#allocation5 + $0x9c] sm:$0xf]
        %v251 = vld [vmem:[#allocation5 + $0xa0] sm:$0xf]
        %v252 = vld [vmem:[#allocation5 + $0xa4] sm:$0xf]
        %v253 = vld [vmem:[#allocation5 + $0xa8] sm:$0xf]
        %v254 = vld [vmem:[#allocation5 + $0xac] sm:$0xf]
        %v255 = vld [vmem:[#allocation5 + $0xb0] sm:$0xf]
        %v256 = vld [vmem:[#allocation5 + $0xb4] sm:$0xf]
        %v257 = vld [vmem:[#allocation5 + $0xb8] sm:$0xf]
        %v258 = vld [vmem:[#allocation5 + $0xbc] sm:$0xf]
        %v259 = vld [vmem:[#allocation5 + $0xc0] sm:$0xf]
        %v260 = vld [vmem:[#allocation5 + $0xc4] sm:$0xf]
        %v261 = vld [vmem:[#allocation5 + $0xc8] sm:$0xf]
        %v262 = vld [vmem:[#allocation5 + $0xcc] sm:$0xf]
        %v263 = vld [vmem:[#allocation5 + $0xd0] sm:$0xf]
        %v264 = vld [vmem:[#allocation5 + $0xd4] sm:$0xf]
        %v265 = vld [vmem:[#allocation5 + $0xd8] sm:$0xf]
        %v266 = vld [vmem:[#allocation5 + $0xdc] sm:$0xf]
        %v267 = vld [vmem:[#allocation5 + $0xe0] sm:$0xf]
        %v268 = vld [vmem:[#allocation5 + $0xe4] sm:$0xf]
        %v269 = vld [vmem:[#allocation5 + $0xe8] sm:$0xf]
        %v270 = vld [vmem:[#allocation5 + $0xec] sm:$0xf]
        %v271 = vld [vmem:[#allocation5 + $0xf0] sm:$0xf]
        %v272 = vld [vmem:[#allocation5 + $0xf4] sm:$0xf]
        %v273 = vld [vmem:[#allocation5 + $0xf8] sm:$0xf]
        %v274 = vld [vmem:[#allocation5 + $0xfc] sm:$0xf]
        %v275 = vld [vmem:[#allocation5 + $0x100] sm:$0xf]
        %v276 = vld [vmem:[#allocation5 + $0x104] sm:$0xf]
        %v277 = vld [vmem:[#allocation5 + $0x108] sm:$0xf]
        %v278 = vld [vmem:[#allocation5 + $0x10c] sm:$0xf]
        %v279 = vld [vmem:[#allocation5 + $0x110] sm:$0xf]
        %v280 = vld [vmem:[#allocation5 + $0x114] sm:$0xf]
        %v281 = vld [vmem:[#allocation5 + $0x118] sm:$0xf]
        %v282 = vld [vmem:[#allocation5 + $0x11c] sm:$0xf]
        %v283 = vld [vmem:[#allocation5 + $0x120] sm:$0xf]
        %v284 = vld [vmem:[#allocation5 + $0x124] sm:$0xf]
        %v285 = vld [vmem:[#allocation5 + $0x128] sm:$0xf]
        %v286 = vld [vmem:[#allocation5 + $0x12c] sm:$0xf]
        %v287 = vld [vmem:[#allocation5 + $0x130] sm:$0xf]
        %v288 = vld [vmem:[#allocation5 + $0x134] sm:$0xf]
        %v289 = vld [vmem:[#allocation5 + $0x138] sm:$0xf]
        %v290 = vld [vmem:[#allocation5 + $0x13c] sm:$0xf]
        %v291 = vld [vmem:[#allocation5 + $0x140] sm:$0xf]
        %v292 = vld [vmem:[#allocation5 + $0x144] sm:$0xf]
        %v293 = vld [vmem:[#allocation5 + $0x148] sm:$0xf]
        %v294 = vld [vmem:[#allocation5 + $0x14c] sm:$0xf]
        %v295 = vld [vmem:[#allocation5 + $0x150] sm:$0xf]
        %v296 = vld [vmem:[#allocation5 + $0x154] sm:$0xf]
        %v297 = vld [vmem:[#allocation5 + $0x158] sm:$0xf]
        %v298 = vld [vmem:[#allocation5 + $0x15c] sm:$0xf]
        %v299 = vld [vmem:[#allocation5 + $0x160] sm:$0xf]
        %v300 = vld [vmem:[#allocation5 + $0x164] sm:$0xf]
        %v301 = vld [vmem:[#allocation5 + $0x168] sm:$0xf]
        %v302 = vld [vmem:[#allocation5 + $0x16c] sm:$0xf]
        %v303 = vld [vmem:[#allocation5 + $0x170] sm:$0xf]
        %v304 = vld [vmem:[#allocation5 + $0x174] sm:$0xf]
        %v305 = vld [vmem:[#allocation5 + $0x178] sm:$0xf]
        %v306 = vld [vmem:[#allocation5 + $0x17c] sm:$0xf]
        %v307 = vld [vmem:[#allocation5 + $0x180] sm:$0xf]
        %v308 = vld [vmem:[#allocation5 + $0x184] sm:$0xf]
        %v309 = vld [vmem:[%s2] sm:$0x1]
        %v311 = vperm.slane %v309, 0
        %v317 = vunpack.c.l.b16 %v207
        %v318 = vunpack.c.h.b16 %v207
        %v319 = vunpack.c.l.b16 %v208
        %v320 = vunpack.c.h.b16 %v208
        %v321 = vunpack.c.l.b16 %v209
        %v322 = vunpack.c.h.b16 %v209
        %v323 = vunpack.c.l.b16 %v210
        %v324 = vpack.c.b16 %v317, %v317
        %v325 = vpack.c.b16 %v318, %v318
        %v326 = vpack.c.b16 %v319, %v319
        %v327 = vpack.c.b16 %v320, %v320
        %v328 = vpack.c.b16 %v321, %v321
        %v329 = vpack.c.b16 %v322, %v322
        %v330 = vpack.c.b16 %v323, %v323
        %v435 = vunpack.c.l.b16 %v211
        %v436 = vunpack.c.l.b16 %v212
        %v437 = vunpack.c.l.b16 %v213
        %v438 = vunpack.c.l.b16 %v214
        %v439 = vunpack.c.l.b16 %v215
        %v440 = vunpack.c.l.b16 %v216
        %v441 = vunpack.c.l.b16 %v217
        %v442 = vunpack.c.l.b16 %v218
        %v443 = vunpack.c.l.b16 %v219
        %v444 = vunpack.c.l.b16 %v220
        %v445 = vunpack.c.l.b16 %v221
        %v446 = vunpack.c.l.b16 %v222
        %v447 = vunpack.c.l.b16 %v223
        %v448 = vunpack.c.l.b16 %v224
        %v449 = vunpack.c.l.b16 %v225
        %v450 = vunpack.c.l.b16 %v226
        %v451 = vunpack.c.l.b16 %v227
        %v452 = vunpack.c.l.b16 %v228
        %v453 = vunpack.c.l.b16 %v229
        %v454 = vunpack.c.l.b16 %v230
        %v455 = vunpack.c.l.b16 %v231
        %v456 = vunpack.c.l.b16 %v232
        %v457 = vunpack.c.l.b16 %v233
        %v458 = vunpack.c.l.b16 %v234
        %v459 = vunpack.c.l.b16 %v235
        %v460 = vunpack.c.l.b16 %v236
        %v461 = vunpack.c.l.b16 %v237
        %v462 = vunpack.c.l.b16 %v238
        %v463 = vunpack.c.l.b16 %v239
        %v464 = vunpack.c.l.b16 %v240
        %v465 = vunpack.c.l.b16 %v241
        %v466 = vunpack.c.l.b16 %v242
        %v467 = vunpack.c.l.b16 %v243
        %v468 = vunpack.c.l.b16 %v244
        %v469 = vunpack.c.l.b16 %v245
        %v470 = vunpack.c.l.b16 %v246
        %v471 = vunpack.c.l.b16 %v247
        %v472 = vunpack.c.l.b16 %v248
        %v473 = vunpack.c.l.b16 %v249
        %v474 = vunpack.c.l.b16 %v250
        %v475 = vunpack.c.l.b16 %v251
        %v476 = vunpack.c.l.b16 %v252
        %v477 = vunpack.c.l.b16 %v253
        %v478 = vunpack.c.l.b16 %v254
        %v479 = vunpack.c.l.b16 %v255
        %v480 = vunpack.c.l.b16 %v256
        %v481 = vunpack.c.l.b16 %v257
        %v482 = vunpack.c.l.b16 %v258
        %v483 = vunpack.c.l.b16 %v259
        %v484 = vunpack.c.l.b16 %v260
        %v485 = vunpack.c.l.b16 %v261
        %v486 = vunpack.c.l.b16 %v262
        %v487 = vunpack.c.l.b16 %v263
        %v488 = vunpack.c.l.b16 %v264
        %v489 = vunpack.c.l.b16 %v265
        %v490 = vunpack.c.l.b16 %v266
        %v491 = vunpack.c.l.b16 %v267
        %v492 = vunpack.c.l.b16 %v268
        %v493 = vunpack.c.l.b16 %v269
        %v494 = vunpack.c.l.b16 %v270
        %v495 = vunpack.c.l.b16 %v271
        %v496 = vunpack.c.l.b16 %v272
        %v497 = vunpack.c.l.b16 %v273
        %v498 = vunpack.c.l.b16 %v274
        %v499 = vunpack.c.l.b16 %v275
        %v500 = vunpack.c.l.b16 %v276
        %v501 = vunpack.c.l.b16 %v277
        %v502 = vunpack.c.l.b16 %v278
        %v503 = vunpack.c.l.b16 %v279
        %v504 = vunpack.c.l.b16 %v280
        %v505 = vunpack.c.l.b16 %v281
        %v506 = vunpack.c.l.b16 %v282
        %v507 = vunpack.c.l.b16 %v283
        %v508 = vunpack.c.l.b16 %v284
        %v509 = vunpack.c.l.b16 %v285
        %v510 = vunpack.c.l.b16 %v286
        %v511 = vunpack.c.l.b16 %v287
        %v512 = vunpack.c.l.b16 %v288
        %v513 = vunpack.c.l.b16 %v289
        %v514 = vunpack.c.l.b16 %v290
        %v515 = vunpack.c.l.b16 %v291
        %v516 = vunpack.c.l.b16 %v292
        %v517 = vunpack.c.l.b16 %v293
        %v518 = vunpack.c.l.b16 %v294
        %v519 = vunpack.c.l.b16 %v295
        %v520 = vunpack.c.l.b16 %v296
        %v521 = vunpack.c.l.b16 %v297
        %v522 = vunpack.c.l.b16 %v298
        %v523 = vunpack.c.l.b16 %v299
        %v524 = vunpack.c.l.b16 %v300
        %v525 = vunpack.c.l.b16 %v301
        %v526 = vunpack.c.l.b16 %v302
        %v527 = vunpack.c.l.b16 %v303
        %v528 = vunpack.c.l.b16 %v304
        %v529 = vunpack.c.l.b16 %v305
        %v530 = vunpack.c.l.b16 %v306
        %v531 = vunpack.c.l.b16 %v307
        %v532 = vunpack.c.l.b16 %v308
        %v533 = vpack.c.b16 %v436, %v435
        %v534 = vpack.c.b16 %v438, %v437
        %v535 = vpack.c.b16 %v440, %v439
        %v536 = vpack.c.b16 %v442, %v441
        %v537 = vpack.c.b16 %v444, %v443
        %v538 = vpack.c.b16 %v446, %v445
        %v539 = vpack.c.b16 %v448, %v447
        %v540 = vpack.c.b16 %v450, %v449
        %v541 = vpack.c.b16 %v452, %v451
        %v542 = vpack.c.b16 %v454, %v453
        %v543 = vpack.c.b16 %v456, %v455
        %v544 = vpack.c.b16 %v458, %v457
        %v545 = vpack.c.b16 %v460, %v459
        %v546 = vpack.c.b16 %v462, %v461
        %v547 = vpack.c.b16 %v464, %v463
        %v548 = vpack.c.b16 %v466, %v465
        %v549 = vpack.c.b16 %v468, %v467
        %v550 = vpack.c.b16 %v470, %v469
        %v551 = vpack.c.b16 %v472, %v471
        %v552 = vpack.c.b16 %v474, %v473
        %v553 = vpack.c.b16 %v476, %v475
        %v554 = vpack.c.b16 %v478, %v477
        %v555 = vpack.c.b16 %v480, %v479
        %v556 = vpack.c.b16 %v482, %v481
        %v557 = vpack.c.b16 %v484, %v483
        %v558 = vpack.c.b16 %v486, %v485
        %v559 = vpack.c.b16 %v488, %v487
        %v560 = vpack.c.b16 %v490, %v489
        %v561 = vpack.c.b16 %v492, %v491
        %v562 = vpack.c.b16 %v494, %v493
        %v563 = vpack.c.b16 %v496, %v495
        %v564 = vpack.c.b16 %v498, %v497
        %v565 = vpack.c.b16 %v500, %v499
        %v566 = vpack.c.b16 %v502, %v501
        %v567 = vpack.c.b16 %v504, %v503
        %v568 = vpack.c.b16 %v506, %v505
        %v569 = vpack.c.b16 %v508, %v507
        %v570 = vpack.c.b16 %v510, %v509
        %v571 = vpack.c.b16 %v512, %v511
        %v572 = vpack.c.b16 %v514, %v513
        %v573 = vpack.c.b16 %v516, %v515
        %v574 = vpack.c.b16 %v518, %v517
        %v575 = vpack.c.b16 %v520, %v519
        %v576 = vpack.c.b16 %v522, %v521
        %v577 = vpack.c.b16 %v524, %v523
        %v578 = vpack.c.b16 %v526, %v525
        %v579 = vpack.c.b16 %v528, %v527
        %v580 = vpack.c.b16 %v530, %v529
        %v581 = vpack.c.b16 %v532, %v531
        %vm631 = vcmask 130048
        %v633 = vsel %vm631, %v330, 0
        %635 = vmatpush.bf16.msra.mxu0 %v540
        %636 = vmatpush.bf16.msra.mxu0 %v539
        %637 = vmatpush.bf16.msra.mxu0 %v538
        %638 = vmatpush.bf16.msra.mxu0 %v537
        %639 = vmatpush.bf16.msra.mxu0 %v536
        %640 = vmatpush.bf16.msra.mxu0 %v535
        %641 = vmatpush.bf16.msra.mxu0 %v534
        %642 = vmatpush.bf16.msra.mxu0 %v533
        %643 = vmatmul.bf16.gmra.mxu0 %v324
        %v644 = vpop.f32.mrf.mxu0
        %v645 = vadd.f32 %v311, %v644
        %v646 = vpop.f32.mrf.mxu0
        %647 = vdwg.mxu0
        %648 = vmatpush.bf16.msra.mxu0 %v548
        %649 = vmatpush.bf16.msra.mxu0 %v547
        %650 = vmatpush.bf16.msra.mxu0 %v546
        %651 = vmatpush.bf16.msra.mxu0 %v545
        %652 = vmatpush.bf16.msra.mxu0 %v544
        %653 = vmatpush.bf16.msra.mxu0 %v543
        %654 = vmatpush.bf16.msra.mxu0 %v542
        %655 = vmatpush.bf16.msra.mxu0 %v541
        %656 = vmatmul.bf16.gmra.mxu0 %v325
        %v657 = vpop.f32.mrf.mxu0
        %v658 = vadd.f32 %v645, %v657
        %v659 = vpop.f32.mrf.mxu0
        %660 = vdwg.mxu0
        %661 = vmatpush.bf16.msra.mxu0 %v556
        %662 = vmatpush.bf16.msra.mxu0 %v555
        %663 = vmatpush.bf16.msra.mxu0 %v554
        %664 = vmatpush.bf16.msra.mxu0 %v553
        %665 = vmatpush.bf16.msra.mxu0 %v552
        %666 = vmatpush.bf16.msra.mxu0 %v551
        %667 = vmatpush.bf16.msra.mxu0 %v550
        %668 = vmatpush.bf16.msra.mxu0 %v549
        %669 = vmatmul.bf16.gmra.mxu0 %v326
        %v670 = vpop.f32.mrf.mxu0
        %v671 = vadd.f32 %v658, %v670
        %v672 = vpop.f32.mrf.mxu0
        %673 = vdwg.mxu0
        %674 = vmatpush.bf16.msra.mxu0 %v564
        %675 = vmatpush.bf16.msra.mxu0 %v563
        %676 = vmatpush.bf16.msra.mxu0 %v562
        %677 = vmatpush.bf16.msra.mxu0 %v561
        %678 = vmatpush.bf16.msra.mxu0 %v560
        %679 = vmatpush.bf16.msra.mxu0 %v559
        %680 = vmatpush.bf16.msra.mxu0 %v558
        %681 = vmatpush.bf16.msra.mxu0 %v557
        %682 = vmatmul.bf16.gmra.mxu0 %v327
        %v683 = vpop.f32.mrf.mxu0
        %v684 = vadd.f32 %v671, %v683
        %v685 = vpop.f32.mrf.mxu0
        %686 = vdwg.mxu0
        %687 = vmatpush.bf16.msra.mxu0 %v572
        %688 = vmatpush.bf16.msra.mxu0 %v571
        %689 = vmatpush.bf16.msra.mxu0 %v570
        %690 = vmatpush.bf16.msra.mxu0 %v569
        %691 = vmatpush.bf16.msra.mxu0 %v568
        %692 = vmatpush.bf16.msra.mxu0 %v567
        %693 = vmatpush.bf16.msra.mxu0 %v566
        %694 = vmatpush.bf16.msra.mxu0 %v565
        %695 = vmatmul.bf16.gmra.mxu0 %v328
        %v696 = vpop.f32.mrf.mxu0
        %v697 = vadd.f32 %v684, %v696
        %v698 = vpop.f32.mrf.mxu0
        %699 = vdwg.mxu0
        %700 = vmatpush.bf16.msra.mxu0 %v580
        %701 = vmatpush.bf16.msra.mxu0 %v579
        %702 = vmatpush.bf16.msra.mxu0 %v578
        %703 = vmatpush.bf16.msra.mxu0 %v577
        %704 = vmatpush.bf16.msra.mxu0 %v576
        %705 = vmatpush.bf16.msra.mxu0 %v575
        %706 = vmatpush.bf16.msra.mxu0 %v574
        %707 = vmatpush.bf16.msra.mxu0 %v573
        %708 = vmatmul.bf16.gmra.mxu0 %v329
        %v709 = vpop.f32.mrf.mxu0
        %v710 = vadd.f32 %v697, %v709
        %v711 = vpop.f32.mrf.mxu0
        %712 = vdwg.mxu0
        %713 = vmatpush.bf16.msra.mxu0 0
        %714 = vmatpush.bf16.msra.mxu0 0
        %715 = vmatpush.bf16.msra.mxu0 0
        %716 = vmatpush.bf16.msra.mxu0 0
        %717 = vmatpush.bf16.msra.mxu0 0
        %718 = vmatpush.bf16.msra.mxu0 0
        %719 = vmatpush.bf16.msra.mxu0 0
        %720 = vmatpush.bf16.msra.mxu0 %v581
        %721 = vmatmul.bf16.gmra.mxu0 %v633
        %v722 = vpop.f32.mrf.mxu0
        %v723 = vadd.f32 %v710, %v722
        %v724 = vpop.f32.mrf.mxu0
        %725 = vdwg.mxu0
        %726 = vst [vmem:[%s205] sm:$0xff] %v723
        %s727 = sand.u32 %s97, 1
        %s728 = scalar_lea.sflag [#allocation4], %s727
        %s729 = sand.u32 %s97, 1
        %s730 = smul.addr %s729, 8
        %s731 = scalar_lea.vmem [#allocation7], %s730
        // Predicated region
        $region41: #{tpu_custom_call.1} parent=31 // pred_check
          %p732 = pneg %p107
        $region42: #{tpu_custom_call.1} parent=31 // pred_check_branch
          %734 = sbr.rel (%p732) target = $region44
        $region43: #{tpu_custom_call.1} parent=31 // pred_region
          %736 = vsyncadd %s728, 0
          %s737 = smul.addr %s21, 8
          %s738 = scalar_lea.hbm %s3, %s737
          %s740 = sshll.u32 %s731, 4
          %s741 = int_to_ptr.vmem [resolvable:$true] %s740
          %s742 = sshll.u32 %s738, 4
          %s743 = int_to_ptr.hbm [resolvable:$true] %s742
          %745 = dma.vmem_to_hbm [thread:$0]  %s741, 128, %s743, %s728
        $region44: #{tpu_custom_call.1} parent=31 // pred_fallthru
          _
      $region32: #{tpu_custom_call.1} parent=5 // pred_fallthru
        _
      %p746 = scmp.le.s32.totalorder 2, %s16
      // Predicated region
      $region45: #{tpu_custom_call.1} parent=5 // pred_check
        %p747 = pneg %p746
      $region46: #{tpu_custom_call.1} parent=5 // pred_check_branch
        %749 = sbr.rel (%p747) target = $region48
      $region47: #{tpu_custom_call.1} parent=5 // pred_region
        %s750 = ssub.s32 %s16, 2
        // Predicated region
        $region49: #{tpu_custom_call.1} parent=47 // pred_check
          %p751 = pneg %p113
        $region50: #{tpu_custom_call.1} parent=47 // pred_check_branch
          %753 = sbr.rel (%p751) target = $region52
        $region51: #{tpu_custom_call.1} parent=47 // pred_region
          %s754 = sand.u32 %s98, 1
          %s755 = scalar_lea.sflag [#allocation4], %s754
          %s756 = sand.u32 %s98, 1
          %s757 = smul.addr %s756, 8
          %s758 = scalar_lea.vmem [#allocation7], %s757
          %760 = dma.done %s755, 128
        $region52: #{tpu_custom_call.1} parent=47 // pred_fallthru
          _
      $region48: #{tpu_custom_call.1} parent=5 // pred_fallthru
        _
    $region6: #{tpu_custom_call.1} parent=1 // loop_footer
      %s20 = sadd.s32 1, %s16
    $region7: #{tpu_custom_call.1} parent=1 // loop_footer_branch
      %15 = sbr.rel target = $region3
    $region8: #{tpu_custom_call.1} parent=1 // loop_exit
      _
    %761 = vsyncpa [#allocation3], 1
    %s762 = scalar_lea.sflag [#allocation3], 1
    %763 = vsyncpa %s762, 1
    %764 = vsyncpa [#allocation6], 1
    %765 = vsyncpa [#allocation4], 1
    %s766 = scalar_lea.sflag [#allocation4], 1
    %767 = vsyncpa %s766, 1

// kernel: tpu_custom_call.1
$region0: #{tpu_custom_call.1}
  #allocation0 [shape = 'u32[]', space=smem, size = 0x4, offset = 0x4, fixed_abs, tag = 'smem constant byte address 0x4 - core index']
  #allocation1 [shape = 'u32[72,128]{1,0:T(1,128)}', space=vmem, size = 0x9000, scoped, tag = 'internal scratch']
  %s0 = inlined_call_operand.hbm [shape: bf16[16,784], index: 0, kind: input, shape index: {}]
  %s1 = inlined_call_operand.hbm [shape: bf16[784,128], index: 1, kind: input, shape index: {}]
  %s2 = inlined_call_operand.vmem [shape: f32[1,128], index: 2, kind: input, shape index: {}]
  %s3 = inlined_call_operand.hbm [shape: f32[16,128], index: 3, kind: output, shape index: {}]
  %s4 = sld [smem:[#allocation0]]
  $region53: #{tpu_custom_call.1} parent=0
    _
  %s6 = ssub.s32 1, %s4
  %s7 = scalar_select 0, %s6, %s4
  $region1: #{tpu_custom_call.1} parent=0
    #allocation2 [shape = 'u8[28672]{0}', space=vmem, size = 0x7000, scoped, tag = 'input window, operand 0']
    #allocation3 [shape = 's32[2]{0}', space=sflag, size = 0x8, scoped, tag = 'scoped memory for tpu_custom_call.1']
    #allocation4 [shape = 's32[2]{0}', space=sflag, size = 0x8, scoped, tag = 'scoped memory for tpu_custom_call.1']
    #allocation5 [shape = 'u8[200704]{0}', space=vmem, size = 0x31000, scoped, tag = 'input window, operand 1, single buffered']
    #allocation6 [shape = 's32[1]{0}', space=sflag, size = 0x4, scoped, tag = 'scoped memory for tpu_custom_call.1']
    #allocation7 [shape = 'u8[8192]{0}', space=vmem, size = 0x2000, scoped, tag = 'output window, operand 0']
    %8 = vsyncpa [#allocation3], 0
    %s9 = scalar_lea.sflag [#allocation3], 1
    %10 = vsyncpa %s9, 0
    %11 = vsyncpa [#allocation6], 0
    %12 = vsyncpa [#allocation4], 0
    %s13 = scalar_lea.sflag [#allocation4], 1
    %14 = vsyncpa %s13, 0
    loop: start=0, step=1, limit=4
    $region2: #{tpu_custom_call.1} parent=1 // loop_pre_header
      _
    $region3: #{tpu_custom_call.1} parent=1 // loop_header
      %s16 = sphi 0, %s20
      %p17 = scmp.ge.s32.totalorder %s16, 4
      %s26 = sphi 0, %s28
      %s29 = sphi 0, %s26
      %s30 = sphi 0, %s29
      %s46 = sphi 0, %s30
      %s50 = sphi 0, %s50
      %s52 = sphi 0, %s50
      %s53 = sphi 0, %s52
      %s67 = sphi 0, %s53
      %s71 = sphi 0, %s71
      %s73 = sphi 0, %s71
      %s74 = sphi 0, %s73
      %s88 = sphi 0, %s74
      %s94 = sphi 0, %s96
      %s97 = sphi 0, %s94
      %s98 = sphi 0, %s97
      %s114 = sphi 0, %s98
    $region4: #{tpu_custom_call.1} parent=1 // loop_header_branch
      %19 = sbr.rel (%p17) target = $region8
    $region5: #{tpu_custom_call.1} parent=1 // loop_body
      %s21 = ssub.s32 %s16, 1
      %s22 = ssub.s32 %s16, 2
      %s23 = sadd.s32 %s16, 1
      %s24 = ssub.s32 %s16, %s23
      %p25 = scmp.eq.s32.totalorder %s24, 0
      %s27 = sadd.s32 %s26, 1
      %s28 = scalar_select %p25, %s26, %s27
      %p31 = pneg %p25
      %p32 = scmp.eq.s32.totalorder %s16, 1
      %p33 = por %p31, %p32
      %p34 = scmp.ne.s32.totalorder %s26, %s29
      %p35 = scmp.eq.s32.totalorder %s16, 0
      %p36 = por %p34, %p35
      %p37 = scmp.ne.s32.totalorder %s26, %s29
      %p38 = scmp.eq.s32.totalorder %s21, 1
      %p39 = por %p37, %p38
      %p40 = scmp.ne.s32.totalorder %s29, %s30
      %p41 = scmp.eq.s32.totalorder %s21, 0
      %p42 = por %p40, %p41
      %p43 = scmp.ne.s32.totalorder %s29, %s30
      %p44 = scmp.eq.s32.totalorder %s22, 1
      %p45 = por %p43, %p44
      %p47 = scmp.ne.s32.totalorder %s30, %s46
      %p48 = scmp.eq.s32.totalorder %s22, 0
      %p49 = por %p47, %p48
      %s51 = sadd.s32 %s50, 1
      %p54 = scmp.eq.s32.totalorder %s16, 1
      %p55 = scmp.ne.s32.totalorder %s50, %s52
      %p56 = scmp.eq.s32.totalorder %s16, 0
      %p57 = por %p55, %p56
      %p58 = scmp.ne.s32.totalorder %s50, %s52
      %p59 = scmp.eq.s32.totalorder %s21, 1
      %p60 = por %p58, %p59
      %p61 = scmp.ne.s32.totalorder %s52, %s53
      %p62 = scmp.eq.s32.totalorder %s21, 0
      %p63 = por %p61, %p62
      %p64 = scmp.ne.s32.totalorder %s52, %s53
      %p65 = scmp.eq.s32.totalorder %s22, 1
      %p66 = por %p64, %p65
      %p68 = scmp.ne.s32.totalorder %s53, %s67
      %p69 = scmp.eq.s32.totalorder %s22, 0
      %p70 = por %p68, %p69
      %s72 = sadd.s32 %s71, 1
      %p75 = scmp.eq.s32.totalorder %s16, 1
      %p76 = scmp.ne.s32.totalorder %s71, %s73
      %p77 = scmp.eq.s32.totalorder %s16, 0
      %p78 = por %p76, %p77
      %p79 = scmp.ne.s32.totalorder %s71, %s73
      %p80 = scmp.eq.s32.totalorder %s21, 1
      %p81 = por %p79, %p80
      %p82 = scmp.ne.s32.totalorder %s73, %s74
      %p83 = scmp.eq.s32.totalorder %s21, 0
      %p84 = por %p82, %p83
      %p85 = scmp.ne.s32.totalorder %s73, %s74
      %p86 = scmp.eq.s32.totalorder %s22, 1
      %p87 = por %p85, %p86
      %p89 = scmp.ne.s32.totalorder %s74, %s88
      %p90 = scmp.eq.s32.totalorder %s22, 0
      %p91 = por %p89, %p90
      %s92 = ssub.s32 %s16, %s23
      %p93 = scmp.eq.s32.totalorder %s92, 0
      %s95 = sadd.s32 %s94, 1
      %s96 = scalar_select %p93, %s94, %s95
      %p99 = pneg %p93
      %p100 = scmp.eq.s32.totalorder %s16, 1
      %p101 = por %p99, %p100
      %p102 = scmp.ne.s32.totalorder %s94, %s97
      %p103 = scmp.eq.s32.totalorder %s16, 0
      %p104 = por %p102, %p103
      %p105 = scmp.ne.s32.totalorder %s94, %s97
      %p106 = scmp.eq.s32.totalorder %s21, 1
      %p107 = por %p105, %p106
      %p108 = scmp.ne.s32.totalorder %s97, %s98
      %p109 = scmp.eq.s32.totalorder %s21, 0
      %p110 = por %p108, %p109
      %p111 = scmp.ne.s32.totalorder %s97, %s98
      %p112 = scmp.eq.s32.totalorder %s22, 1
      %p113 = por %p111, %p112
      %p115 = scmp.ne.s32.totalorder %s98, %s114
      %p116 = scmp.eq.s32.totalorder %s22, 0
      %p117 = por %p115, %p116
      %p118 = scmp.le.s32.totalorder 1, %s16
      %p119 = scmp.lt.s32.totalorder %s16, 3
      %p120 = pnand %p118, %p119
      %p121 = pneg %p120
      // Predicated region
      $region9: #{tpu_custom_call.1} parent=5 // pred_check
        _
      $region10: #{tpu_custom_call.1} parent=5 // pred_check_branch
        %123 = sbr.rel (%p120) target = $region12
      $region11: #{tpu_custom_call.1} parent=5 // pred_region
        %s124 = ssub.s32 %s16, 1
        // Predicated region
        $region13: #{tpu_custom_call.1} parent=11 // pred_check
          %p125 = pneg %p63
        $region14: #{tpu_custom_call.1} parent=11 // pred_check_branch
          %127 = sbr.rel (%p125) target = $region16
        $region15: #{tpu_custom_call.1} parent=11 // pred_region
          %129 = vsyncadd [#allocation6], 0
          %s130 = sshll.u32 %s1, 4
          %s131 = int_to_ptr.hbm [resolvable:$true] %s130
          %s132 = sshll.u32 [#allocation5], 4
          %s133 = int_to_ptr.vmem [resolvable:$true] %s132
          %138 = dma.hbm_to_vmem [thread:$0]  %s131, 6272, %s133, [#allocation6], 64, 64, 4
        $region16: #{tpu_custom_call.1} parent=11 // pred_fallthru
          _
        // Predicated region
        $region17: #{tpu_custom_call.1} parent=11 // pred_check
          %p139 = pneg %p84
        $region18: #{tpu_custom_call.1} parent=11 // pred_check_branch
          %141 = sbr.rel (%p139) target = $region20
        $region19: #{tpu_custom_call.1} parent=11 // pred_region
          _
        $region20: #{tpu_custom_call.1} parent=11 // pred_fallthru
          _
      $region12: #{tpu_custom_call.1} parent=5 // pred_fallthru
        _
      %p142 = scmp.lt.s32.totalorder %s16, 2
      // Predicated region
      $region21: #{tpu_custom_call.1} parent=5 // pred_check
        %p143 = pneg %p142
      $region22: #{tpu_custom_call.1} parent=5 // pred_check_branch
        %145 = sbr.rel (%p143) target = $region24
      $region23: #{tpu_custom_call.1} parent=5 // pred_region
        // Predicated region
        $region25: #{tpu_custom_call.1} parent=23 // pred_check
          %p146 = pneg %p36
        $region26: #{tpu_custom_call.1} parent=23 // pred_check_branch
          %148 = sbr.rel (%p146) target = $region28
        $region27: #{tpu_custom_call.1} parent=23 // pred_region
          %s149 = sand.u32 %s26, 1
          %s150 = scalar_lea.sflag [#allocation3], %s149
          %s151 = sand.u32 %s26, 1
          %s152 = smul.addr %s151, 28
          %s153 = scalar_lea.vmem [#allocation2], %s152
          %155 = vsyncadd %s150, 0
          %s156 = smul.addr %s16, 7
          %s157 = smul.addr %s156, 4
          %s158 = scalar_lea.hbm %s0, %s157
          %s160 = sshll.u32 %s158, 4
          %s161 = int_to_ptr.hbm [resolvable:$true] %s160
          %s162 = sshll.u32 %s153, 4
          %s163 = int_to_ptr.vmem [resolvable:$true] %s162
          %165 = dma.hbm_to_vmem [thread:$0]  %s161, 448, %s163, %s150
        $region28: #{tpu_custom_call.1} parent=23 // pred_fallthru
          _
      $region24: #{tpu_custom_call.1} parent=5 // pred_fallthru
        _
      %p166 = scmp.le.s32.totalorder 1, %s16
      %p167 = scmp.lt.s32.totalorder %s16, 3
      %p168 = pnand %p166, %p167
      %p169 = pneg %p168
      // Predicated region
      $region29: #{tpu_custom_call.1} parent=5 // pred_check
        _
      $region30: #{tpu_custom_call.1} parent=5 // pred_check_branch
        %171 = sbr.rel (%p168) target = $region32
      $region31: #{tpu_custom_call.1} parent=5 // pred_region
        %s172 = ssub.s32 %s16, 1
        %s173 = sand.u32 %s29, 1
        %s174 = scalar_lea.sflag [#allocation3], %s173
        %s175 = sand.u32 %s29, 1
        %s176 = smul.addr %s175, 28
        %s177 = scalar_lea.vmem [#allocation2], %s176
        // Predicated region
        $region33: #{tpu_custom_call.1} parent=31 // pred_check
          %p178 = pneg %p42
        $region34: #{tpu_custom_call.1} parent=31 // pred_check_branch
          %180 = sbr.rel (%p178) target = $region36
        $region35: #{tpu_custom_call.1} parent=31 // pred_region
          %182 = dma.done %s174, 448
        $region36: #{tpu_custom_call.1} parent=31 // pred_fallthru
          _
        // Predicated region
        $region37: #{tpu_custom_call.1} parent=31 // pred_check
          %p183 = pneg %p63
        $region38: #{tpu_custom_call.1} parent=31 // pred_check_branch
          %185 = sbr.rel (%p183) target = $region40
        $region39: #{tpu_custom_call.1} parent=31 // pred_region
          %187 = dma.done [#allocation6], 6272
        $region40: #{tpu_custom_call.1} parent=31 // pred_fallthru
          _
        %s188 = sand.u32 %s29, 1
        %s189 = scalar_lea.sflag [#allocation3], %s188
        %s190 = sand.u32 %s29, 1
        %s191 = smul.addr %s190, 28
        %s192 = scalar_lea.vmem [#allocation2], %s191
        %p193 = pneg %p42
        %p194 = pneg %p39
        %p195 = pneg %p63
        %p196 = pneg %p60
        %p197 = pneg %p84
        %p198 = pneg %p81
        %p199 = pneg %p110
        %p200 = pneg %p107
        %s201 = sand.u32 %s97, 1
        %s202 = scalar_lea.sflag [#allocation4], %s201
        %s203 = sand.u32 %s97, 1
        %s204 = smul.addr %s203, 8
        %s205 = scalar_lea.vmem [#allocation7], %s204
        %v207 = vld [vmem:[%s177] sm:$0xff]
        %v208 = vld [vmem:[%s177 + $0x8] sm:$0xff]
        %v209 = vld [vmem:[%s177 + $0x10] sm:$0xff]
        %v210 = vld [vmem:[%s177 + $0x18] sm:$0xf]
        %v211 = vld [vmem:[#allocation5] sm:$0xf]
        %v212 = vld [vmem:[#allocation5 + $0x4] sm:$0xf]
        %v213 = vld [vmem:[#allocation5 + $0x8] sm:$0xf]
        %v214 = vld [vmem:[#allocation5 + $0xc] sm:$0xf]
        %v215 = vld [vmem:[#allocation5 + $0x10] sm:$0xf]
        %v216 = vld [vmem:[#allocation5 + $0x14] sm:$0xf]
        %v217 = vld [vmem:[#allocation5 + $0x18] sm:$0xf]
        %v218 = vld [vmem:[#allocation5 + $0x1c] sm:$0xf]
        %v219 = vld [vmem:[#allocation5 + $0x20] sm:$0xf]
        %v220 = vld [vmem:[#allocation5 + $0x24] sm:$0xf]
        %v221 = vld [vmem:[#allocation5 + $0x28] sm:$0xf]
        %v222 = vld [vmem:[#allocation5 + $0x2c] sm:$0xf]
        %v223 = vld [vmem:[#allocation5 + $0x30] sm:$0xf]
        %v224 = vld [vmem:[#allocation5 + $0x34] sm:$0xf]
        %v225 = vld [vmem:[#allocation5 + $0x38] sm:$0xf]
        %v226 = vld [vmem:[#allocation5 + $0x3c] sm:$0xf]
        %v227 = vld [vmem:[#allocation5 + $0x40] sm:$0xf]
        %v228 = vld [vmem:[#allocation5 + $0x44] sm:$0xf]
        %v229 = vld [vmem:[#allocation5 + $0x48] sm:$0xf]
        %v230 = vld [vmem:[#allocation5 + $0x4c] sm:$0xf]
        %v231 = vld [vmem:[#allocation5 + $0x50] sm:$0xf]
        %v232 = vld [vmem:[#allocation5 + $0x54] sm:$0xf]
        %v233 = vld [vmem:[#allocation5 + $0x58] sm:$0xf]
        %v234 = vld [vmem:[#allocation5 + $0x5c] sm:$0xf]
        %v235 = vld [vmem:[#allocation5 + $0x60] sm:$0xf]
        %v236 = vld [vmem:[#allocation5 + $0x64] sm:$0xf]
        %v237 = vld [vmem:[#allocation5 + $0x68] sm:$0xf]
        %v238 = vld [vmem:[#allocation5 + $0x6c] sm:$0xf]
        %v239 = vld [vmem:[#allocation5 + $0x70] sm:$0xf]
        %v240 = vld [vmem:[#allocation5 + $0x74] sm:$0xf]
        %v241 = vld [vmem:[#allocation5 + $0x78] sm:$0xf]
        %v242 = vld [vmem:[#allocation5 + $0x7c] sm:$0xf]
        %v243 = vld [vmem:[#allocation5 + $0x80] sm:$0xf]
        %v244 = vld [vmem:[#allocation5 + $0x84] sm:$0xf]
        %v245 = vld [vmem:[#allocation5 + $0x88] sm:$0xf]
        %v246 = vld [vmem:[#allocation5 + $0x8c] sm:$0xf]
        %v247 = vld [vmem:[#allocation5 + $0x90] sm:$0xf]
        %v248 = vld [vmem:[#allocation5 + $0x94] sm:$0xf]
        %v249 = vld [vmem:[#allocation5 + $0x98] sm:$0xf]
        %v250 = vld [vmem:[#allocation5 + $0x9c] sm:$0xf]
        %v251 = vld [vmem:[#allocation5 + $0xa0] sm:$0xf]
        %v252 = vld [vmem:[#allocation5 + $0xa4] sm:$0xf]
        %v253 = vld [vmem:[#allocation5 + $0xa8] sm:$0xf]
        %v254 = vld [vmem:[#allocation5 + $0xac] sm:$0xf]
        %v255 = vld [vmem:[#allocation5 + $0xb0] sm:$0xf]
        %v256 = vld [vmem:[#allocation5 + $0xb4] sm:$0xf]
        %v257 = vld [vmem:[#allocation5 + $0xb8] sm:$0xf]
        %v258 = vld [vmem:[#allocation5 + $0xbc] sm:$0xf]
        %v259 = vld [vmem:[#allocation5 + $0xc0] sm:$0xf]
        %v260 = vld [vmem:[#allocation5 + $0xc4] sm:$0xf]
        %v261 = vld [vmem:[#allocation5 + $0xc8] sm:$0xf]
        %v262 = vld [vmem:[#allocation5 + $0xcc] sm:$0xf]
        %v263 = vld [vmem:[#allocation5 + $0xd0] sm:$0xf]
        %v264 = vld [vmem:[#allocation5 + $0xd4] sm:$0xf]
        %v265 = vld [vmem:[#allocation5 + $0xd8] sm:$0xf]
        %v266 = vld [vmem:[#allocation5 + $0xdc] sm:$0xf]
        %v267 = vld [vmem:[#allocation5 + $0xe0] sm:$0xf]
        %v268 = vld [vmem:[#allocation5 + $0xe4] sm:$0xf]
        %v269 = vld [vmem:[#allocation5 + $0xe8] sm:$0xf]
        %v270 = vld [vmem:[#allocation5 + $0xec] sm:$0xf]
        %v271 = vld [vmem:[#allocation5 + $0xf0] sm:$0xf]
        %v272 = vld [vmem:[#allocation5 + $0xf4] sm:$0xf]
        %v273 = vld [vmem:[#allocation5 + $0xf8] sm:$0xf]
        %v274 = vld [vmem:[#allocation5 + $0xfc] sm:$0xf]
        %v275 = vld [vmem:[#allocation5 + $0x100] sm:$0xf]
        %v276 = vld [vmem:[#allocation5 + $0x104] sm:$0xf]
        %v277 = vld [vmem:[#allocation5 + $0x108] sm:$0xf]
        %v278 = vld [vmem:[#allocation5 + $0x10c] sm:$0xf]
        %v279 = vld [vmem:[#allocation5 + $0x110] sm:$0xf]
        %v280 = vld [vmem:[#allocation5 + $0x114] sm:$0xf]
        %v281 = vld [vmem:[#allocation5 + $0x118] sm:$0xf]
        %v282 = vld [vmem:[#allocation5 + $0x11c] sm:$0xf]
        %v283 = vld [vmem:[#allocation5 + $0x120] sm:$0xf]
        %v284 = vld [vmem:[#allocation5 + $0x124] sm:$0xf]
        %v285 = vld [vmem:[#allocation5 + $0x128] sm:$0xf]
        %v286 = vld [vmem:[#allocation5 + $0x12c] sm:$0xf]
        %v287 = vld [vmem:[#allocation5 + $0x130] sm:$0xf]
        %v288 = vld [vmem:[#allocation5 + $0x134] sm:$0xf]
        %v289 = vld [vmem:[#allocation5 + $0x138] sm:$0xf]
        %v290 = vld [vmem:[#allocation5 + $0x13c] sm:$0xf]
        %v291 = vld [vmem:[#allocation5 + $0x140] sm:$0xf]
        %v292 = vld [vmem:[#allocation5 + $0x144] sm:$0xf]
        %v293 = vld [vmem:[#allocation5 + $0x148] sm:$0xf]
        %v294 = vld [vmem:[#allocation5 + $0x14c] sm:$0xf]
        %v295 = vld [vmem:[#allocation5 + $0x150] sm:$0xf]
        %v296 = vld [vmem:[#allocation5 + $0x154] sm:$0xf]
        %v297 = vld [vmem:[#allocation5 + $0x158] sm:$0xf]
        %v298 = vld [vmem:[#allocation5 + $0x15c] sm:$0xf]
        %v299 = vld [vmem:[#allocation5 + $0x160] sm:$0xf]
        %v300 = vld [vmem:[#allocation5 + $0x164] sm:$0xf]
        %v301 = vld [vmem:[#allocation5 + $0x168] sm:$0xf]
        %v302 = vld [vmem:[#allocation5 + $0x16c] sm:$0xf]
        %v303 = vld [vmem:[#allocation5 + $0x170] sm:$0xf]
        %v304 = vld [vmem:[#allocation5 + $0x174] sm:$0xf]
        %v305 = vld [vmem:[#allocation5 + $0x178] sm:$0xf]
        %v306 = vld [vmem:[#allocation5 + $0x17c] sm:$0xf]
        %v307 = vld [vmem:[#allocation5 + $0x180] sm:$0xf]
        %v308 = vld [vmem:[#allocation5 + $0x184] sm:$0xf]
        %v309 = vld [vmem:[%s2] sm:$0x1]
        %v311 = vperm.slane %v309, 0
        %v317 = vunpack.c.l.b16 %v207
        %v318 = vunpack.c.h.b16 %v207
        %v319 = vunpack.c.l.b16 %v208
        %v320 = vunpack.c.h.b16 %v208
        %v321 = vunpack.c.l.b16 %v209
        %v322 = vunpack.c.h.b16 %v209
        %v323 = vunpack.c.l.b16 %v210
        %v324 = vpack.c.b16 %v317, %v317
        %v325 = vpack.c.b16 %v318, %v318
        %v326 = vpack.c.b16 %v319, %v319
        %v327 = vpack.c.b16 %v320, %v320
        %v328 = vpack.c.b16 %v321, %v321
        %v329 = vpack.c.b16 %v322, %v322
        %v330 = vpack.c.b16 %v323, %v323
        %v435 = vunpack.c.l.b16 %v211
        %v436 = vunpack.c.l.b16 %v212
        %v437 = vunpack.c.l.b16 %v213
        %v438 = vunpack.c.l.b16 %v214
        %v439 = vunpack.c.l.b16 %v215
        %v440 = vunpack.c.l.b16 %v216
        %v441 = vunpack.c.l.b16 %v217
        %v442 = vunpack.c.l.b16 %v218
        %v443 = vunpack.c.l.b16 %v219
        %v444 = vunpack.c.l.b16 %v220
        %v445 = vunpack.c.l.b16 %v221
        %v446 = vunpack.c.l.b16 %v222
        %v447 = vunpack.c.l.b16 %v223
        %v448 = vunpack.c.l.b16 %v224
        %v449 = vunpack.c.l.b16 %v225
        %v450 = vunpack.c.l.b16 %v226
        %v451 = vunpack.c.l.b16 %v227
        %v452 = vunpack.c.l.b16 %v228
        %v453 = vunpack.c.l.b16 %v229
        %v454 = vunpack.c.l.b16 %v230
        %v455 = vunpack.c.l.b16 %v231
        %v456 = vunpack.c.l.b16 %v232
        %v457 = vunpack.c.l.b16 %v233
        %v458 = vunpack.c.l.b16 %v234
        %v459 = vunpack.c.l.b16 %v235
        %v460 = vunpack.c.l.b16 %v236
        %v461 = vunpack.c.l.b16 %v237
        %v462 = vunpack.c.l.b16 %v238
        %v463 = vunpack.c.l.b16 %v239
        %v464 = vunpack.c.l.b16 %v240
        %v465 = vunpack.c.l.b16 %v241
        %v466 = vunpack.c.l.b16 %v242
        %v467 = vunpack.c.l.b16 %v243
        %v468 = vunpack.c.l.b16 %v244
        %v469 = vunpack.c.l.b16 %v245
        %v470 = vunpack.c.l.b16 %v246
        %v471 = vunpack.c.l.b16 %v247
        %v472 = vunpack.c.l.b16 %v248
        %v473 = vunpack.c.l.b16 %v249
        %v474 = vunpack.c.l.b16 %v250
        %v475 = vunpack.c.l.b16 %v251
        %v476 = vunpack.c.l.b16 %v252
        %v477 = vunpack.c.l.b16 %v253
        %v478 = vunpack.c.l.b16 %v254
        %v479 = vunpack.c.l.b16 %v255
        %v480 = vunpack.c.l.b16 %v256
        %v481 = vunpack.c.l.b16 %v257
        %v482 = vunpack.c.l.b16 %v258
        %v483 = vunpack.c.l.b16 %v259
        %v484 = vunpack.c.l.b16 %v260
        %v485 = vunpack.c.l.b16 %v261
        %v486 = vunpack.c.l.b16 %v262
        %v487 = vunpack.c.l.b16 %v263
        %v488 = vunpack.c.l.b16 %v264
        %v489 = vunpack.c.l.b16 %v265
        %v490 = vunpack.c.l.b16 %v266
        %v491 = vunpack.c.l.b16 %v267
        %v492 = vunpack.c.l.b16 %v268
        %v493 = vunpack.c.l.b16 %v269
        %v494 = vunpack.c.l.b16 %v270
        %v495 = vunpack.c.l.b16 %v271
        %v496 = vunpack.c.l.b16 %v272
        %v497 = vunpack.c.l.b16 %v273
        %v498 = vunpack.c.l.b16 %v274
        %v499 = vunpack.c.l.b16 %v275
        %v500 = vunpack.c.l.b16 %v276
        %v501 = vunpack.c.l.b16 %v277
        %v502 = vunpack.c.l.b16 %v278
        %v503 = vunpack.c.l.b16 %v279
        %v504 = vunpack.c.l.b16 %v280
        %v505 = vunpack.c.l.b16 %v281
        %v506 = vunpack.c.l.b16 %v282
        %v507 = vunpack.c.l.b16 %v283
        %v508 = vunpack.c.l.b16 %v284
        %v509 = vunpack.c.l.b16 %v285
        %v510 = vunpack.c.l.b16 %v286
        %v511 = vunpack.c.l.b16 %v287
        %v512 = vunpack.c.l.b16 %v288
        %v513 = vunpack.c.l.b16 %v289
        %v514 = vunpack.c.l.b16 %v290
        %v515 = vunpack.c.l.b16 %v291
        %v516 = vunpack.c.l.b16 %v292
        %v517 = vunpack.c.l.b16 %v293
        %v518 = vunpack.c.l.b16 %v294
        %v519 = vunpack.c.l.b16 %v295
        %v520 = vunpack.c.l.b16 %v296
        %v521 = vunpack.c.l.b16 %v297
        %v522 = vunpack.c.l.b16 %v298
        %v523 = vunpack.c.l.b16 %v299
        %v524 = vunpack.c.l.b16 %v300
        %v525 = vunpack.c.l.b16 %v301
        %v526 = vunpack.c.l.b16 %v302
        %v527 = vunpack.c.l.b16 %v303
        %v528 = vunpack.c.l.b16 %v304
        %v529 = vunpack.c.l.b16 %v305
        %v530 = vunpack.c.l.b16 %v306
        %v531 = vunpack.c.l.b16 %v307
        %v532 = vunpack.c.l.b16 %v308
        %v533 = vpack.c.b16 %v436, %v435
        %v534 = vpack.c.b16 %v438, %v437
        %v535 = vpack.c.b16 %v440, %v439
        %v536 = vpack.c.b16 %v442, %v441
        %v537 = vpack.c.b16 %v444, %v443
        %v538 = vpack.c.b16 %v446, %v445
        %v539 = vpack.c.b16 %v448, %v447
        %v540 = vpack.c.b16 %v450, %v449
        %v541 = vpack.c.b16 %v452, %v451
        %v542 = vpack.c.b16 %v454, %v453
        %v543 = vpack.c.b16 %v456, %v455
        %v544 = vpack.c.b16 %v458, %v457
        %v545 = vpack.c.b16 %v460, %v459
        %v546 = vpack.c.b16 %v462, %v461
        %v547 = vpack.c.b16 %v464, %v463
        %v548 = vpack.c.b16 %v466, %v465
        %v549 = vpack.c.b16 %v468, %v467
        %v550 = vpack.c.b16 %v470, %v469
        %v551 = vpack.c.b16 %v472, %v471
        %v552 = vpack.c.b16 %v474, %v473
        %v553 = vpack.c.b16 %v476, %v475
        %v554 = vpack.c.b16 %v478, %v477
        %v555 = vpack.c.b16 %v480, %v479
        %v556 = vpack.c.b16 %v482, %v481
        %v557 = vpack.c.b16 %v484, %v483
        %v558 = vpack.c.b16 %v486, %v485
        %v559 = vpack.c.b16 %v488, %v487
        %v560 = vpack.c.b16 %v490, %v489
        %v561 = vpack.c.b16 %v492, %v491
        %v562 = vpack.c.b16 %v494, %v493
        %v563 = vpack.c.b16 %v496, %v495
        %v564 = vpack.c.b16 %v498, %v497
        %v565 = vpack.c.b16 %v500, %v499
        %v566 = vpack.c.b16 %v502, %v501
        %v567 = vpack.c.b16 %v504, %v503
        %v568 = vpack.c.b16 %v506, %v505
        %v569 = vpack.c.b16 %v508, %v507
        %v570 = vpack.c.b16 %v510, %v509
        %v571 = vpack.c.b16 %v512, %v511
        %v572 = vpack.c.b16 %v514, %v513
        %v573 = vpack.c.b16 %v516, %v515
        %v574 = vpack.c.b16 %v518, %v517
        %v575 = vpack.c.b16 %v520, %v519
        %v576 = vpack.c.b16 %v522, %v521
        %v577 = vpack.c.b16 %v524, %v523
        %v578 = vpack.c.b16 %v526, %v525
        %v579 = vpack.c.b16 %v528, %v527
        %v580 = vpack.c.b16 %v530, %v529
        %v581 = vpack.c.b16 %v532, %v531
        %vm631 = vcmask 130048
        %v633 = vsel %vm631, %v330, 0
        %635 = vmatpush.bf16.msra.mxu0 %v540
        %636 = vmatpush.bf16.msra.mxu0 %v539
        %637 = vmatpush.bf16.msra.mxu0 %v538
        %638 = vmatpush.bf16.msra.mxu0 %v537
        %639 = vmatpush.bf16.msra.mxu0 %v536
        %640 = vmatpush.bf16.msra.mxu0 %v535
        %641 = vmatpush.bf16.msra.mxu0 %v534
        %642 = vmatpush.bf16.msra.mxu0 %v533
        %643 = vmatmul.bf16.gmra.mxu0 %v324
        %v644 = vpop.f32.mrf.mxu0
        %v645 = vadd.f32 %v311, %v644
        %v646 = vpop.f32.mrf.mxu0
        %647 = vdwg.mxu0
        %648 = vmatpush.bf16.msra.mxu0 %v548
        %649 = vmatpush.bf16.msra.mxu0 %v547
        %650 = vmatpush.bf16.msra.mxu0 %v546
        %651 = vmatpush.bf16.msra.mxu0 %v545
        %652 = vmatpush.bf16.msra.mxu0 %v544
        %653 = vmatpush.bf16.msra.mxu0 %v543
        %654 = vmatpush.bf16.msra.mxu0 %v542
        %655 = vmatpush.bf16.msra.mxu0 %v541
        %656 = vmatmul.bf16.gmra.mxu0 %v325
        %v657 = vpop.f32.mrf.mxu0
        %v658 = vadd.f32 %v645, %v657
        %v659 = vpop.f32.mrf.mxu0
        %660 = vdwg.mxu0
        %661 = vmatpush.bf16.msra.mxu0 %v556
        %662 = vmatpush.bf16.msra.mxu0 %v555
        %663 = vmatpush.bf16.msra.mxu0 %v554
        %664 = vmatpush.bf16.msra.mxu0 %v553
        %665 = vmatpush.bf16.msra.mxu0 %v552
        %666 = vmatpush.bf16.msra.mxu0 %v551
        %667 = vmatpush.bf16.msra.mxu0 %v550
        %668 = vmatpush.bf16.msra.mxu0 %v549
        %669 = vmatmul.bf16.gmra.mxu0 %v326
        %v670 = vpop.f32.mrf.mxu0
        %v671 = vadd.f32 %v658, %v670
        %v672 = vpop.f32.mrf.mxu0
        %673 = vdwg.mxu0
        %674 = vmatpush.bf16.msra.mxu0 %v564
        %675 = vmatpush.bf16.msra.mxu0 %v563
        %676 = vmatpush.bf16.msra.mxu0 %v562
        %677 = vmatpush.bf16.msra.mxu0 %v561
        %678 = vmatpush.bf16.msra.mxu0 %v560
        %679 = vmatpush.bf16.msra.mxu0 %v559
        %680 = vmatpush.bf16.msra.mxu0 %v558
        %681 = vmatpush.bf16.msra.mxu0 %v557
        %682 = vmatmul.bf16.gmra.mxu0 %v327
        %v683 = vpop.f32.mrf.mxu0
        %v684 = vadd.f32 %v671, %v683
        %v685 = vpop.f32.mrf.mxu0
        %686 = vdwg.mxu0
        %687 = vmatpush.bf16.msra.mxu0 %v572
        %688 = vmatpush.bf16.msra.mxu0 %v571
        %689 = vmatpush.bf16.msra.mxu0 %v570
        %690 = vmatpush.bf16.msra.mxu0 %v569
        %691 = vmatpush.bf16.msra.mxu0 %v568
        %692 = vmatpush.bf16.msra.mxu0 %v567
        %693 = vmatpush.bf16.msra.mxu0 %v566
        %694 = vmatpush.bf16.msra.mxu0 %v565
        %695 = vmatmul.bf16.gmra.mxu0 %v328
        %v696 = vpop.f32.mrf.mxu0
        %v697 = vadd.f32 %v684, %v696
        %v698 = vpop.f32.mrf.mxu0
        %699 = vdwg.mxu0
        %700 = vmatpush.bf16.msra.mxu0 %v580
        %701 = vmatpush.bf16.msra.mxu0 %v579
        %702 = vmatpush.bf16.msra.mxu0 %v578
        %703 = vmatpush.bf16.msra.mxu0 %v577
        %704 = vmatpush.bf16.msra.mxu0 %v576
        %705 = vmatpush.bf16.msra.mxu0 %v575
        %706 = vmatpush.bf16.msra.mxu0 %v574
        %707 = vmatpush.bf16.msra.mxu0 %v573
        %708 = vmatmul.bf16.gmra.mxu0 %v329
        %v709 = vpop.f32.mrf.mxu0
        %v710 = vadd.f32 %v697, %v709
        %v711 = vpop.f32.mrf.mxu0
        %712 = vdwg.mxu0
        %713 = vmatpush.bf16.msra.mxu0 0
        %714 = vmatpush.bf16.msra.mxu0 0
        %715 = vmatpush.bf16.msra.mxu0 0
        %716 = vmatpush.bf16.msra.mxu0 0
        %717 = vmatpush.bf16.msra.mxu0 0
        %718 = vmatpush.bf16.msra.mxu0 0
        %719 = vmatpush.bf16.msra.mxu0 0
        %720 = vmatpush.bf16.msra.mxu0 %v581
        %721 = vmatmul.bf16.gmra.mxu0 %v633
        %v722 = vpop.f32.mrf.mxu0
        %v723 = vadd.f32 %v710, %v722
        %v724 = vpop.f32.mrf.mxu0
        %725 = vdwg.mxu0
        %726 = vst [vmem:[%s205] sm:$0xff] %v723
        %s727 = sand.u32 %s97, 1
        %s728 = scalar_lea.sflag [#allocation4], %s727
        %s729 = sand.u32 %s97, 1
        %s730 = smul.addr %s729, 8
        %s731 = scalar_lea.vmem [#allocation7], %s730
        // Predicated region
        $region41: #{tpu_custom_call.1} parent=31 // pred_check
          %p732 = pneg %p107
        $region42: #{tpu_custom_call.1} parent=31 // pred_check_branch
          %734 = sbr.rel (%p732) target = $region44
        $region43: #{tpu_custom_call.1} parent=31 // pred_region
          %736 = vsyncadd %s728, 0
          %s737 = smul.addr %s21, 8
          %s738 = scalar_lea.hbm %s3, %s737
          %s740 = sshll.u32 %s731, 4
          %s741 = int_to_ptr.vmem [resolvable:$true] %s740
          %s742 = sshll.u32 %s738, 4
          %s743 = int_to_ptr.hbm [resolvable:$true] %s742
          %745 = dma.vmem_to_hbm [thread:$0]  %s741, 128, %s743, %s728
        $region44: #{tpu_custom_call.1} parent=31 // pred_fallthru
          _
      $region32: #{tpu_custom_call.1} parent=5 // pred_fallthru
        _
      %p746 = scmp.le.s32.totalorder 2, %s16
      // Predicated region
      $region45: #{tpu_custom_call.1} parent=5 // pred_check
        %p747 = pneg %p746
      $region46: #{tpu_custom_call.1} parent=5 // pred_check_branch
        %749 = sbr.rel (%p747) target = $region48
      $region47: #{tpu_custom_call.1} parent=5 // pred_region
        %s750 = ssub.s32 %s16, 2
        // Predicated region
        $region49: #{tpu_custom_call.1} parent=47 // pred_check
          %p751 = pneg %p113
        $region50: #{tpu_custom_call.1} parent=47 // pred_check_branch
          %753 = sbr.rel (%p751) target = $region52
        $region51: #{tpu_custom_call.1} parent=47 // pred_region
          %s754 = sand.u32 %s98, 1
          %s755 = scalar_lea.sflag [#allocation4], %s754
          %s756 = sand.u32 %s98, 1
          %s757 = smul.addr %s756, 8
          %s758 = scalar_lea.vmem [#allocation7], %s757
          %760 = dma.done %s755, 128
        $region52: #{tpu_custom_call.1} parent=47 // pred_fallthru
          _
      $region48: #{tpu_custom_call.1} parent=5 // pred_fallthru
        _
    $region6: #{tpu_custom_call.1} parent=1 // loop_footer
      %s20 = sadd.s32 1, %s16
    $region7: #{tpu_custom_call.1} parent=1 // loop_footer_branch
      %15 = sbr.rel target = $region3
    $region8: #{tpu_custom_call.1} parent=1 // loop_exit
      _
    %761 = vsyncpa [#allocation3], 1
    %s762 = scalar_lea.sflag [#allocation3], 1
    %763 = vsyncpa %s762, 1
    %764 = vsyncpa [#allocation6], 1
    %765 = vsyncpa [#allocation4], 1
    %s766 = scalar_lea.sflag [#allocation4], 1
    %767 = vsyncpa %s766, 1

</llo_original>
